<compile_context>
chip_gen: v6e
topology: v6e:2x2x1
jax: 0.10.0
libtpu: 0.0.40
codegen_flags: <defaults>
</compile_context>

<pallas_src>
import math
from functools import partial

import jax
import jax.numpy as jnp
from jax import lax
from jax.experimental import pallas as pl
from jax.experimental.pallas import tpu as pltpu


# ----------------------------------------------------------------------------
# helpers
# ----------------------------------------------------------------------------
def _pick_tile(n, cap=512):
    """Largest divisor of n from a power-of-two ladder that is <= cap, else n."""
    for c in (1024, 512, 256, 128, 64, 32, 16, 8):
        if c <= cap and n % c == 0:
            return c
    return n


def _gen_tuning():
    """(vmem_limit_bytes, tn_cap) picked per TPU generation."""
    try:
        cap = int(pltpu.get_tpu_info().vmem_capacity_bytes)
    except Exception:
        cap = 64 * 1024 * 1024
    if cap >= 120 * 1024 * 1024:          # v5e / v6e: 128 MiB physical VMEM
        return 100 * 1024 * 1024, 512
    return 40 * 1024 * 1024, 256          # v7x: 64 MiB physical VMEM


def _maybe_downsample_mask(mask, n_query):
    """Replicates the strided spatial downsampling of encoder_attention_mask."""
    b, w_h, l = mask.shape
    if w_h != n_query:
        scale = int((w_h // n_query) ** 0.5)
        w = h = int(w_h ** 0.5)
        mask = mask.reshape(b, w, h, l)[:, ::scale, ::scale, :].reshape(b, -1, l)
    return mask


def _prepare_mask(mask, n_query):
    """Returns (perform_mask int32 (B,), mask_arr (B,N,L), bool_mask flag).

    perform_mask is computed from the ORIGINAL (pre-downsample) mask, matching
    the PyTorch forward.  Boolean masks are passed to the kernel as int8 and
    converted to the (1 - m) * -10000 additive bias on the VPU; float masks
    stay f32 and are used additively (diffusers Attention semantics).
    """
    perform_mask = (jnp.mean(mask.astype(jnp.float32), axis=(1, 2)) != 1.0).astype(jnp.int32)
    mask = _maybe_downsample_mask(mask, n_query)
    if mask.dtype == jnp.bool_:
        return perform_mask, mask.astype(jnp.int8), True
    return perform_mask, mask.astype(jnp.float32), False


# ----------------------------------------------------------------------------
# Kernel 1: encoder_hid_proj  (y = x @ W + b), row-tiled, bf16 output
# ----------------------------------------------------------------------------
def _linear_kernel(x_ref, w_ref, b_ref, o_ref):
    acc = jnp.dot(x_ref[...].astype(jnp.bfloat16), w_ref[...],
                  preferred_element_type=jnp.float32) + b_ref[...]
    o_ref[...] = acc.astype(o_ref.dtype)


def linear_pallas(x, w, b, *, tm=None):
    """x: (M, K), w: (K, N) f32, b: (1, N) f32 -> (M, N) bf16."""
    M, K = x.shape
    N = w.shape[1]
    if tm is None:
        tm = _pick_tile(M, cap=512)
    vmem_limit, _ = _gen_tuning()
    return pl.pallas_call(
        _linear_kernel,
        out_shape=jax.ShapeDtypeStruct((M, N), jnp.bfloat16),
        grid=(M // tm,),
        in_specs=[
            pl.BlockSpec((tm, K), lambda i: (i, 0)),
            pl.BlockSpec((K, N), lambda i: (0, 0), pipeline_mode=pl.Buffered(1)),
            pl.BlockSpec((1, N), lambda i: (0, 0), pipeline_mode=pl.Buffered(1)),
        ],
        out_specs=pl.BlockSpec((tm, N), lambda i: (i, 0)),
        compiler_params=pltpu.CompilerParams(
            dimension_semantics=("parallel",),
            vmem_limit_bytes=vmem_limit,
        ),
    )(x, w.astype(jnp.bfloat16), b)


# ----------------------------------------------------------------------------
# Kernel 2: fused CrossAttnCopy forward, (batch, N-tile) grid
# ----------------------------------------------------------------------------
def _cross_attn_copy_kernel(
    pm_ref,                  # SMEM (B,) int32 : perform_mask (scalar prefetch)
    hs_ref,                  # (1, TN, D)  bf16 hidden_states tile
    enc_ref,                 # (1, L, Dc)  bf16 encoder / layout hidden states
    mask_ref,                # (1, TN, L)  int8 (bool masks) or f32 (float masks)
    wq_ref, bq_ref,          # (D, ID) bf16 (gamma & 1/sqrt(hd) folded), (1, ID) f32
    wk_ref, wv_ref,          # (Dc, ID) bf16
    wout_ref, bout_ref,      # (ID, D) bf16 fused wo@wc, (1, D) f32 fused bias
    o_ref,                   # (1, TN, D)  bf16
    *, heads, head_dim, eps, bool_mask,
):
    b = pl.program_id(0)
    pm = pm_ref[b]
    bft = jnp.bfloat16

    # perform_mask == 0  ->  output is exactly the input (skip all compute)
    @pl.when(pm == 0)
    def _():
        o_ref[...] = hs_ref[...]

    @pl.when(pm != 0)
    def _():
        x = hs_ref[0].astype(jnp.float32)                        # (TN, D) f32

        # LayerNorm (f32); affine + q-scale are folded into wq/bq on the host.
        mean = jnp.mean(x, axis=-1, keepdims=True)
        var = jnp.mean(jnp.square(x - mean), axis=-1, keepdims=True)
        xn = ((x - mean) * lax.rsqrt(var + eps)).astype(bft)     # (TN, D) bf16

        enc = enc_ref[0]                                          # (L, Dc) bf16

        # Projections (bf16 operands, f32 accumulation on the MXU).
        q = (jnp.dot(xn, wq_ref[...], preferred_element_type=jnp.float32)
             + bq_ref[0]).astype(bft)                             # (TN, ID)
        k = jnp.dot(enc, wk_ref[...], preferred_element_type=jnp.float32).astype(bft)
        v = jnp.dot(enc, wv_ref[...], preferred_element_type=jnp.float32).astype(bft)

        # Additive attention bias built on the VPU (f32).
        if bool_mask:
            bias = (1.0 - mask_ref[0].astype(jnp.float32)) * -10000.0
        else:
            bias = mask_ref[0]

        # Per-head attention via static contiguous lane slices (no relayout).
        parts = []
        for h in range(heads):
            lo, hi = h * head_dim, (h + 1) * head_dim
            qh, kh, vh = q[:, lo:hi], k[:, lo:hi], v[:, lo:hi]
            logits = lax.dot_general(qh, kh, (((1,), (1,)), ((), ())),
                                     preferred_element_type=jnp.float32)  # (TN, L)
            logits = logits + bias
            logits = logits - jnp.max(logits, axis=-1, keepdims=True)
            p = jnp.exp(logits)
            p = p * pl.reciprocal(jnp.sum(p, axis=-1, keepdims=True), approx=True)
            parts.append(
                jnp.dot(p.astype(bft), vh, preferred_element_type=jnp.float32).astype(bft)
            )
        attn = jnp.concatenate(parts, axis=-1)                    # (TN, ID) bf16

        # Fused to_out[0] + zero-init 1x1 conv (single MXU matmul) + residual.
        out = jnp.dot(attn, wout_ref[...], preferred_element_type=jnp.float32) + bout_ref[0]
        o_ref[0] = (x + out).astype(o_ref.dtype)


def cross_attn_copy_forward(
    params,
    hidden_states,
    encoder_hidden_states=None,
    encoder_attention_mask=None,
    timestep=None,                    # ada_norm unused (norm_type='layer_norm')
    cross_attention_mask=None,
    layout_hidden_states=None,
    tn=None,
    **kwargs,
):
    mask = encoder_attention_mask if cross_attention_mask is None else cross_attention_mask
    enc = encoder_hidden_states if layout_hidden_states is None else layout_hidden_states

    B, N, D = hidden_states.shape
    L, Dc = enc.shape[1], enc.shape[2]
    heads, head_dim = params["heads"], params["head_dim"]
    ID = heads * head_dim
    # PyTorch applies Conv2d(inner_dim, inner_dim) to channel=dim activations.
    assert D == ID, "CrossAttnCopy conv_block requires dim == heads * head_dim"

    perform_mask, mask_arr, bool_mask = _prepare_mask(mask, N)    # (B,), (B,N,L)

    # Host-side weight folding (tiny; constant-folded under jit).
    scale = 1.0 / math.sqrt(head_dim)
    gamma = params["gamma"][0]
    beta = params["beta"][0]
    wq_f = params["wq"] * (gamma * scale)[:, None]                # (D, ID)
    bq_f = ((beta * scale) @ params["wq"]).reshape(1, ID)         # (1, ID)
    wout = params["wo"] @ params["wc"]                            # (ID, D)
    bout = params["bo"] @ params["wc"] + params["bc"]             # (1, D)

    vmem_limit, tn_cap = _gen_tuning()
    if tn is None:
        tn = _pick_tile(N, cap=tn_cap)
    assert N % tn == 0, "sequence length must be divisible by the N tile"

    bft = jnp.bfloat16
    kernel = partial(_cross_attn_copy_kernel, heads=heads, head_dim=head_dim,
                     eps=1e-5, bool_mask=bool_mask)

    def wspec(shape):  # weights: constant index, single-buffered, stay resident
        return pl.BlockSpec(shape, lambda b, n, pm: (0,) * len(shape),
                            pipeline_mode=pl.Buffered(1))

    hs_bf = hidden_states.astype(bft)

    out = pl.pallas_call(
        kernel,
        out_shape=jax.ShapeDtypeStruct((B, N, D), bft),
        grid_spec=pltpu.PrefetchScalarGridSpec(
            num_scalar_prefetch=1,                                # perform_mask
            grid=(B, N // tn),
            in_specs=[
                pl.BlockSpec((1, tn, D), lambda b, n, pm: (b, n, 0)),          # hs (bf16)
                # skipped batches (pm==0) reuse block 0 -> fetch dedups
                pl.BlockSpec((1, L, Dc), lambda b, n, pm: (b * pm[b], 0, 0)),  # enc (bf16)
                pl.BlockSpec((1, tn, L),
                             lambda b, n, pm: (b * pm[b], n * pm[b], 0)),      # mask
                wspec((D, ID)),                                    # wq (folded)
                wspec((1, ID)),                                    # bq (folded)
                wspec((Dc, ID)),                                   # wk
                wspec((Dc, ID)),                                   # wv
                wspec((ID, D)),                                    # wo@wc fused
                wspec((1, D)),                                     # bias fused
            ],
            out_specs=pl.BlockSpec((1, tn, D), lambda b, n, pm: (b, n, 0)),
        ),
        # hidden_states (call arg 1, after the scalar-prefetch arg) aliases output 0
        input_output_aliases={1: 0},
        compiler_params=pltpu.CompilerParams(
            dimension_semantics=("arbitrary", "parallel"),
            vmem_limit_bytes=vmem_limit,
        ),
    )(
        perform_mask,
        hs_bf,
        enc.astype(bft),
        mask_arr,
        wq_f.astype(bft), bq_f.astype(jnp.float32),
        params["wk"].astype(bft), params["wv"].astype(bft),
        wout.astype(bft), bout.astype(jnp.float32),
    )
    return out


# ----------------------------------------------------------------------------
# Pure-JAX reference (unfused weights, f32 math; mirrors the bf16 I/O only)
# ----------------------------------------------------------------------------
def cross_attn_copy_reference(params, hidden_states, mask, enc):
    heads, hd = params["heads"], params["head_dim"]
    B, N, D = hidden_states.shape
    perform_mask = (jnp.mean(mask.astype(jnp.float32), axis=(1, 2)) != 1.0)
    m_ds = _maybe_downsample_mask(mask, N)
    if m_ds.dtype == jnp.bool_:
        bias = (1.0 - m_ds.astype(jnp.float32)) * -10000.0
    else:
        bias = m_ds.astype(jnp.float32)

    x = hidden_states.astype(jnp.bfloat16).astype(jnp.float32)   # mirror bf16 I/O
    enc = enc.astype(jnp.float32)
    mean = x.mean(-1, keepdims=True)
    var = ((x - mean) ** 2).mean(-1, keepdims=True)
    xn = (x - mean) / jnp.sqrt(var + 1e-5) * params["gamma"][0] + params["beta"][0]

    scale = 1.0 / math.sqrt(hd)
    q = xn @ params["wq"] * scale
    k = enc @ params["wk"]
    v = enc @ params["wv"]
    L = k.shape[1]
    qh = q.reshape(B, N, heads, hd)
    kh = k.reshape(B, L, heads, hd)
    vh = v.reshape(B, L, heads, hd)

    logits = jnp.einsum("bnhd,blhd->bhnl", qh, kh) + bias[:, None, :, :]
    p = jax.nn.softmax(logits, axis=-1)
    o = jnp.einsum("bhnl,blhd->bnhd", p, vh).reshape(B, N, heads * hd)
    o = o @ params["wo"] + params["bo"][0]
    o = o @ params["wc"] + params["bc"][0]
    return x + o * perform_mask.astype(jnp.float32)[:, None, None]


# ----------------------------------------------------------------------------
# Parameter construction (deterministic, from __init__ shapes)
# ----------------------------------------------------------------------------
def make_cross_attn_params(key, dim, heads, head_dim, cross_dim, zero_conv=True,
                           random_affine=False):
    inner = heads * head_dim
    ks = jax.random.split(key, 9)
    s = 0.05
    if random_affine:
        gamma = 1.0 + 0.1 * jax.random.normal(ks[7], (1, dim), jnp.float32)
        beta = s * jax.random.normal(ks[8], (1, dim), jnp.float32)
    else:
        gamma = jnp.ones((1, dim), jnp.float32)                   # LayerNorm defaults
        beta = jnp.zeros((1, dim), jnp.float32)
    params = {
        "heads": heads,
        "head_dim": head_dim,
        "gamma": gamma,
        "beta": beta,
        "wq": s * jax.random.normal(ks[0], (dim, inner), jnp.float32),
        "wk": s * jax.random.normal(ks[1], (cross_dim, inner), jnp.float32),
        "wv": s * jax.random.normal(ks[2], (cross_dim, inner), jnp.float32),
        "wo": s * jax.random.normal(ks[3], (inner, dim), jnp.float32),
        "bo": s * jax.random.normal(ks[4], (1, dim), jnp.float32),
    }
    if zero_conv:
        # faithful to zero_module(nn.Conv2d(inner, inner, 1))
        params["wc"] = jnp.zeros((inner, inner), jnp.float32)
        params["bc"] = jnp.zeros((1, inner), jnp.float32)
    else:
        params["wc"] = s * jax.random.normal(ks[5], (inner, inner), jnp.float32)
        params["bc"] = s * jax.random.normal(ks[6], (1, inner), jnp.float32)
    return params


class CLayoutInjectionLayersPallas:
    """JAX/Pallas equivalent of CLayoutInjectionLayers."""

    def __init__(self, key, num_blocks, dim, heads, head_dim, cross_dim,
                 hid_proj_in=None, zero_conv=True):
        ks = jax.random.split(key, num_blocks + 2)
        if hid_proj_in is not None:
            self.proj_w = 0.05 * jax.random.normal(ks[0], (hid_proj_in, cross_dim), jnp.float32)
            self.proj_b = 0.05 * jax.random.normal(ks[1], (1, cross_dim), jnp.float32)
        else:
            self.proj_w = None
            self.proj_b = None
        self.block_params = [
            make_cross_attn_params(ks[2 + i], dim, heads, head_dim, cross_dim, zero_conv)
            for i in range(num_blocks)
        ]

    def forward(self, encoder_hidden_states=None, cross_attention_masks=None, **kwargs):
        if encoder_hidden_states is not None and self.proj_w is not None:
            B, L, Din = encoder_hidden_states.shape
            flat = encoder_hidden_states.reshape(B * L, Din)
            encoder_hidden_states = linear_pallas(flat, self.proj_w, self.proj_b).reshape(
                B, L, self.proj_w.shape[1]
            )
        attn_outputs = []
        for p in self.block_params:
            attn_outputs.append(
                {
                    "cross_layer": partial(cross_attn_copy_forward, p),
                    "x": {
                        "layout_hidden_states": encoder_hidden_states,
                        "cross_attention_mask": cross_attention_masks,
                    },
                }
            )
        return {"attn": attn_outputs}


# ----------------------------------------------------------------------------
if __name__ == "__main__":
    key = jax.random.PRNGKey(0)
    k_hs, k_enc, k_mask, k_mask2, k_mod, k_chk = jax.random.split(key, 6)

    # Small shapes: B=2, N=64 (H=W=8), dim=inner_dim=32, heads=2, head_dim=16,
    # cross_attention_dim=32, L=8, encoder_hid_proj: 24 -> 32.
    B, N, D = 2, 64, 32
    heads, head_dim = 2, 16
    Dc, L, Din = 32, 8, 24
    TN = 32  # N-tile -> grid (B, 2)

    hidden_states = jax.random.normal(k_hs, (B, N, D), jnp.float32)
    enc_raw = jax.random.normal(k_enc, (B, L, Din), jnp.float32)
    # boolean cross-attention masks; batch 0 all True -> perform_mask = 0 (skip path),
    # batch 1 partially False -> perform_mask = 1 (full attention path)
    mask_b1 = jax.random.uniform(k_mask, (1, N, L)) > 0.3
    cross_attention_masks = jnp.concatenate(
        [jnp.ones((1, N, L), jnp.bool_), mask_b1], axis=0
    )

    module = CLayoutInjectionLayersPallas(
        k_mod, num_blocks=2, dim=D, heads=heads, head_dim=head_dim,
        cross_dim=Dc, hid_proj_in=Din, zero_conv=True,
    )

    # --- CLayoutInjectionLayers.forward (encoder_hid_proj runs in a Pallas kernel)
    out = module.forward(
        encoder_hidden_states=enc_raw, cross_attention_masks=cross_attention_masks
    )
    entry = out["attn"][0]
    layout_hs = entry["x"]["layout_hidden_states"]
    jax.block_until_ready(layout_hs)
    assert layout_hs.dtype == jnp.bfloat16

    # check the projection kernel vs plain JAX (bf16 output, bf16 MXU matmul)
    proj_ref = enc_raw.reshape(B * L, Din) @ module.proj_w + module.proj_b
    assert jnp.allclose(layout_hs.astype(jnp.float32).reshape(B * L, Dc),
                        proj_ref, rtol=2e-2, atol=2e-2)

    # --- apply one of the returned CrossAttnCopy layers (fused Pallas kernel)
    hs_out = entry["cross_layer"](
        hidden_states,
        encoder_hidden_states=None,
        encoder_attention_mask=cross_attention_masks,
        tn=TN,
        **entry["x"],
    )
    jax.block_until_ready(hs_out)
    assert hs_out.dtype == jnp.bfloat16
    # zero-init conv -> exact bf16 identity on both the skip and attention paths
    assert jnp.array_equal(hs_out, hidden_states.astype(jnp.bfloat16))
    ref_out = cross_attn_copy_reference(
        module.block_params[0], hidden_states, cross_attention_masks, layout_hs
    )
    assert jnp.allclose(hs_out.astype(jnp.float32), ref_out, rtol=2e-2, atol=2e-2)

    # --- numerical check of the attention/conv path with a non-zero conv and a
    #     non-trivial LayerNorm affine (exercises the host-side weight folding)
    chk_params = make_cross_attn_params(k_chk, D, heads, head_dim, Dc,
                                        zero_conv=False, random_affine=True)
    hs_chk = cross_attn_copy_forward(
        chk_params,
        hidden_states,
        encoder_attention_mask=cross_attention_masks,
        layout_hidden_states=layout_hs,
        tn=TN,
    )
    jax.block_until_ready(hs_chk)
    ref_chk = cross_attn_copy_reference(
        chk_params, hidden_states, cross_attention_masks, layout_hs
    )
    assert jnp.allclose(hs_chk.astype(jnp.float32), ref_chk, rtol=2e-2, atol=2e-2)

    # --- check the mask spatial-downsampling path (mask has 4x the spatial tokens)
    mask_big = jnp.concatenate(
        [jnp.ones((1, 4 * N, L), jnp.bool_),
         jax.random.uniform(k_mask2, (1, 4 * N, L)) > 0.3],
        axis=0,
    )
    hs_ds = cross_attn_copy_forward(
        chk_params,
        hidden_states,
        encoder_attention_mask=mask_big,
        layout_hidden_states=layout_hs,
        tn=TN,
    )
    jax.block_until_ready(hs_ds)
    ref_ds = cross_attn_copy_reference(chk_params, hidden_states, mask_big, layout_hs)
    assert jnp.allclose(hs_ds.astype(jnp.float32), ref_ds, rtol=2e-2, atol=2e-2)

    # TODO(synk): AdaLayerNorm (norm_type='ada_norm') branch and dropout are not
    # implemented; this module instantiates the default nn.LayerNorm inference
    # path, which is what is kernelized.
    print("KERNEL_OK")
</pallas_src>

<mosaic_0001>
module attributes {stable_mosaic.version = 11 : i64} {
  func.func @_linear_kernel(%arg0: i32, %arg1: memref<16x24xf32, #tpu.memory_space<vmem>>, %arg2: memref<24x32xbf16, #tpu.memory_space<vmem>>, %arg3: memref<1x32xf32, #tpu.memory_space<vmem>>, %arg4: memref<16x32xbf16, #tpu.memory_space<vmem>>) attributes {dimension_semantics = [#tpu.dimension_semantics<parallel>], iteration_bounds = array<i64: 1>, scalar_prefetch = 0 : i64, scratch_operands = 0 : i64, tpu.core_type = #tpu.core_type<tc>, window_params = [{transform_indices = @transform_0, window_bounds = array<i64: 16, 24>}, {pipeline_mode = #tpu.pipeline_mode<synchronous>, transform_indices = @transform_1, window_bounds = array<i64: 24, 32>}, {pipeline_mode = #tpu.pipeline_mode<synchronous>, transform_indices = @transform_2, window_bounds = array<i64: 1, 32>}, {transform_indices = @transform_3, window_bounds = array<i64: 16, 32>}]} {
    %c0 = arith.constant 0 : index
    %c0_0 = arith.constant 0 : index
    %0 = vector.load %arg1[%c0, %c0_0] : memref<16x24xf32, #tpu.memory_space<vmem>>, vector<16x24xf32>
    %1 = arith.truncf %0 : vector<16x24xf32> to vector<16x24xbf16>
    %c0_1 = arith.constant 0 : index
    %c0_2 = arith.constant 0 : index
    %2 = vector.load %arg2[%c0_1, %c0_2] : memref<24x32xbf16, #tpu.memory_space<vmem>>, vector<24x32xbf16>
    %cst = arith.constant dense<0.000000e+00> : vector<16x32xf32>
    %3 = tpu.matmul %1, %2, %cst {dimension_numbers = #tpu.dot_dimension_numbers<[1], [0], [0], [1], [0, 0, 1, 1], [], []>} : vector<16x24xbf16>, vector<24x32xbf16>, vector<16x32xf32> -> vector<16x32xf32>
    %c0_3 = arith.constant 0 : index
    %c0_4 = arith.constant 0 : index
    %4 = vector.load %arg3[%c0_3, %c0_4] : memref<1x32xf32, #tpu.memory_space<vmem>>, vector<1x32xf32>
    %5 = vector.broadcast %4 : vector<1x32xf32> to vector<16x32xf32>
    %6 = arith.addf %3, %5 : vector<16x32xf32>
    %7 = arith.truncf %6 : vector<16x32xf32> to vector<16x32xbf16>
    %c0_5 = arith.constant 0 : index
    %c0_6 = arith.constant 0 : index
    %8 = vector.load %arg4[%c0_5, %c0_6] : memref<16x32xbf16, #tpu.memory_space<vmem>>, vector<16x32xbf16>
    tpu.vector_store %arg4[%c0_5, %c0_6], %7 {strides = array<i32>} : memref<16x32xbf16, #tpu.memory_space<vmem>>, vector<16x32xbf16>,
    return
  }
  func.func @transform_0(%arg0: i32) -> (i32, i32) {
    %c0_i32 = arith.constant 0 : i32
    %c0_i32_0 = arith.constant 0 : i32
    return %arg0, %c0_i32 : i32, i32
  }
  func.func @transform_1(%arg0: i32) -> (i32, i32) {
    %c0_i32 = arith.constant 0 : i32
    %c0_i32_0 = arith.constant 0 : i32
    %c0_i32_1 = arith.constant 0 : i32
    return %c0_i32, %c0_i32_0 : i32, i32
  }
  func.func @transform_2(%arg0: i32) -> (i32, i32) {
    %c0_i32 = arith.constant 0 : i32
    %c0_i32_0 = arith.constant 0 : i32
    %c0_i32_1 = arith.constant 0 : i32
    return %c0_i32, %c0_i32_0 : i32, i32
  }
  func.func @transform_3(%arg0: i32) -> (i32, i32) {
    %c0_i32 = arith.constant 0 : i32
    %c0_i32_0 = arith.constant 0 : i32
    return %arg0, %c0_i32 : i32, i32
  }
}

</mosaic_0001>

<llo_original>
// kernel: tpu_custom_call.1
$region0: #{tpu_custom_call.1}
  #allocation0 [shape = 'u32[]', space=smem, size = 0x4, offset = 0x4, fixed_abs, tag = 'smem constant byte address 0x4 - core index']
  #allocation1 [shape = 'u32[144,128]{1,0:T(1,128)}', space=vmem, size = 0x12000, scoped, tag = 'internal scratch']
  %s0 = inlined_call_operand.hbm [shape: f32[16,24], index: 0, kind: input, shape index: {}]
  %s1 = inlined_call_operand.hbm [shape: bf16[24,32], index: 1, kind: input, shape index: {}]
  %s2 = inlined_call_operand.vmem [shape: f32[1,32], index: 2, kind: input, shape index: {}]
  %s3 = inlined_call_operand.hbm [shape: bf16[16,32], index: 3, kind: output, shape index: {}]
  %s4 = sld [smem:[#allocation0]]
  $region30: #{tpu_custom_call.1} parent=0
    _
  %s6 = ssub.s32 1, %s4
  %s7 = scalar_select 0, %s6, %s4
  $region1: #{tpu_custom_call.1} parent=0
    #allocation2 [shape = 'u8[8192]{0}', space=vmem, size = 0x2000, scoped, tag = 'input window, operand 0, single buffered']
    #allocation3 [shape = 's32[1]{0}', space=sflag, size = 0x4, scoped, tag = 'scoped memory for tpu_custom_call.1']
    #allocation4 [shape = 's32[1]{0}', space=sflag, size = 0x4, scoped, tag = 'scoped memory for tpu_custom_call.1']
    #allocation5 [shape = 'u8[6144]{0}', space=vmem, size = 0x1800, scoped, tag = 'input window, operand 1, single buffered']
    #allocation6 [shape = 's32[1]{0}', space=sflag, size = 0x4, scoped, tag = 'scoped memory for tpu_custom_call.1']
    #allocation7 [shape = 'u8[4096]{0}', space=vmem, size = 0x1000, scoped, tag = 'output window, operand 0, single buffered']
    %8 = vsyncpa [#allocation3], 0
    %9 = vsyncpa [#allocation6], 0
    %10 = vsyncpa [#allocation4], 0
    // Predicated region
    $region2: #{tpu_custom_call.1} parent=1 // pred_check
      _
    $region3: #{tpu_custom_call.1} parent=1 // pred_check_branch
      %12 = sbr.rel (0) target = $region5
    $region4: #{tpu_custom_call.1} parent=1 // pred_region
      %s14 = ssub.s32 256, 256
      %15 = vsyncadd [#allocation3], %s14
      %s16 = sshll.u32 [#allocation2], 4
      %s17 = int_to_ptr.vmem [resolvable:$true] %s16
      %22 = dma.hbm_to_vmem [thread:$0]  %s0, 256, %s17, [#allocation3], 128, 128, 8
    $region5: #{tpu_custom_call.1} parent=1 // pred_fallthru
      _
    // Predicated region
    $region6: #{tpu_custom_call.1} parent=1 // pred_check
      _
    $region7: #{tpu_custom_call.1} parent=1 // pred_check_branch
      %24 = sbr.rel (0) target = $region9
    $region8: #{tpu_custom_call.1} parent=1 // pred_region
      %s26 = ssub.s32 192, 192
      %27 = vsyncadd [#allocation6], %s26
      %s28 = sshll.u32 [#allocation5], 4
      %s29 = int_to_ptr.vmem [resolvable:$true] %s28
      %34 = dma.hbm_to_vmem [thread:$0]  %s1, 192, %s29, [#allocation6], 64, 64, 4
    $region9: #{tpu_custom_call.1} parent=1 // pred_fallthru
      _
    // Predicated region
    $region10: #{tpu_custom_call.1} parent=1 // pred_check
      _
    $region11: #{tpu_custom_call.1} parent=1 // pred_check_branch
      %36 = sbr.rel (0) target = $region13
    $region12: #{tpu_custom_call.1} parent=1 // pred_region
      _
    $region13: #{tpu_custom_call.1} parent=1 // pred_fallthru
      _
    // Predicated region
    $region14: #{tpu_custom_call.1} parent=1 // pred_check
      _
    $region15: #{tpu_custom_call.1} parent=1 // pred_check_branch
      %38 = sbr.rel (0) target = $region17
    $region16: #{tpu_custom_call.1} parent=1 // pred_region
      %39 = dma.done [#allocation3], 256
    $region17: #{tpu_custom_call.1} parent=1 // pred_fallthru
      _
    // Predicated region
    $region18: #{tpu_custom_call.1} parent=1 // pred_check
      _
    $region19: #{tpu_custom_call.1} parent=1 // pred_check_branch
      %41 = sbr.rel (0) target = $region21
    $region20: #{tpu_custom_call.1} parent=1 // pred_region
      %42 = dma.done [#allocation6], 192
    $region21: #{tpu_custom_call.1} parent=1 // pred_fallthru
      _
    %v44 = vld [vmem:[#allocation2] sm:$0xff]
    %v45 = vld [vmem:[#allocation2 + $0x8] sm:$0xff]
    %v46 = vpack.c.bf16 %v45, %v44
    %v47 = vld [vmem:[#allocation5] sm:$0xf]
    %v48 = vld [vmem:[#allocation5 + $0x4] sm:$0xf]
    %v49 = vld [vmem:[#allocation5 + $0x8] sm:$0xf]
    %v50 = vld [vmem:[%s2] sm:$0x1]
    %v52 = vlaneseq
    %v53 = vshrl.u32 %v52, 7
    %v54 = vsub.s32 0, %v53
    %v55 = vrot.slane %v50, %v54
    %v60 = vunpack.c.l.b16 %v47
    %v61 = vunpack.c.l.b16 %v48
    %v62 = vunpack.c.l.b16 %v49
    %v63 = vpack.c.b16 %v61, %v60
    %v64 = vpack.c.b16 %v62, %v62
    %vm66 = vcmask 195584
    %v68 = vsel %vm66, %v46, 0
    %vm70 = vcmask 1043456
    %v72 = vsel %vm70, %v64, 0
    %74 = vmatprep.subr.bf16.mxu0 0
    %75 = vmatpush1.bf16.msra.mxu0 0
    %76 = vmatprep.subr.bf16.mxu0 0
    %77 = vmatpush1.bf16.msra.mxu0 0
    %78 = vmatprep.subr.bf16.mxu0 0
    %79 = vmatpush1.bf16.msra.mxu0 0
    %80 = vmatprep.subr.bf16.mxu0 0
    %81 = vmatpush1.bf16.msra.mxu0 0
    %82 = vmatprep.subr.bf16.mxu0 0
    %83 = vmatpush1.bf16.msra.mxu0 0
    %84 = vmatprep.subr.bf16.mxu0 0
    %85 = vmatpush1.bf16.msra.mxu0 0
    %86 = vmatprep.subr.bf16.mxu0 0
    %87 = vmatpush1.bf16.msra.mxu0 %v72
    %88 = vmatprep.subr.bf16.mxu0 0
    %89 = vmatpush1.bf16.msra.mxu0 %v63
    %90 = vmatprep.subr.bf16.mxu0 0
    %91 = vmatpush2.bf16.msra.mxu0 0
    %92 = vmatprep.subr.bf16.mxu0 0
    %93 = vmatpush2.bf16.msra.mxu0 0
    %94 = vmatprep.subr.bf16.mxu0 0
    %95 = vmatpush2.bf16.msra.mxu0 0
    %96 = vmatprep.subr.bf16.mxu0 0
    %97 = vmatpush2.bf16.msra.mxu0 0
    %98 = vmatprep.subr.bf16.mxu0 0
    %99 = vmatpush2.bf16.msra.mxu0 0
    %100 = vmatprep.subr.bf16.mxu0 0
    %101 = vmatpush2.bf16.msra.mxu0 0
    %102 = vmatprep.subr.bf16.mxu0 0
    %103 = vmatpush2.bf16.msra.mxu0 0
    %104 = vmatprep.subr.bf16.mxu0 0
    %105 = vmatpush2.bf16.msra.mxu0 0
    %106 = vmatprep.mubr.bf16.mxu0 0
    %107 = vmatmul.mubr.bf16.gmra.mxu0 %v68
    %v108 = vpop.f32.mrf.mxu0
    %v109 = vadd.f32 %v55, %v108
    %v110 = vpop.f32.mrf.mxu0
    %v111 = vpop.f32.mrf.mxu0
    %v112 = vadd.f32 %v55, %v111
    %v113 = vpop.f32.mrf.mxu0
    %114 = vdwg.mxu0
    %v115 = vpack.c.bf16 %v112, %v109
    %v117 = vunpack.c.l.b16 %v115
    %v118 = vunpack.c.h.b16 %v115
    %v119 = vpack.c.b16 %v117, %v117
    %v120 = vpack.c.b16 %v118, %v118
    %vm123 = vcmask 257024
    %124 = vst.msk [vmem:[#allocation7] sm:$0xf] %vm123, %v119
    %125 = vst.msk [vmem:[#allocation7 + $0x4] sm:$0xf] %vm123, %v120
    // Predicated region
    $region22: #{tpu_custom_call.1} parent=1 // pred_check
      _
    $region23: #{tpu_custom_call.1} parent=1 // pred_check_branch
      %127 = sbr.rel (0) target = $region25
    $region24: #{tpu_custom_call.1} parent=1 // pred_region
      %s129 = ssub.s32 128, 128
      %130 = vsyncadd [#allocation4], %s129
      %s131 = sshll.u32 [#allocation7], 4
      %s132 = int_to_ptr.vmem [resolvable:$true] %s131
      %137 = dma.vmem_to_hbm [thread:$0]  %s132, 128, %s3, [#allocation4], 64, 64, 4
    $region25: #{tpu_custom_call.1} parent=1 // pred_fallthru
      _
    // Predicated region
    $region26: #{tpu_custom_call.1} parent=1 // pred_check
      _
    $region27: #{tpu_custom_call.1} parent=1 // pred_check_branch
      %139 = sbr.rel (0) target = $region29
    $region28: #{tpu_custom_call.1} parent=1 // pred_region
      %140 = dma.done [#allocation4], 128
    $region29: #{tpu_custom_call.1} parent=1 // pred_fallthru
      _
    %141 = vsyncpa [#allocation3], 1
    %142 = vsyncpa [#allocation6], 1
    %143 = vsyncpa [#allocation4], 1

</llo_original>
